<compile_context>
chip_gen: v7x
topology: tpu7x:2x2x1
jax: 0.10.0
libtpu: 0.0.40
codegen_flags: <defaults>
</compile_context>

<pallas_src>
import jax
import jax.numpy as jnp
from jax.experimental import pallas as pl
from jax.experimental.pallas import tpu as pltpu

_TARGET_BLOCK_BYTES = 8 * 1024 * 1024   # ~8 MiB per block (per dtype-scaled tile)
_VMEM_LIMIT_BYTES = 48 * 1024 * 1024    # 2 bufs x (in + out) x 8 MiB = 32 MiB fits
_LANE_CHOICES = (1024, 512, 256, 128)   # lane-dense widths (multiples of 128)


def _add5_mul2_kernel(x_ref, o_ref):
    # elementwise hot path: (x + 5) * 2 with dtype-matched constants
    x = x_ref[...]
    five = jnp.asarray(5, dtype=x.dtype)
    two = jnp.asarray(2, dtype=x.dtype)
    o_ref[...] = (x + five) * two


def _pick_lanes(n):
    """Largest lane-dense width dividing n; fall back to 128 + padding."""
    for lanes in _LANE_CHOICES:
        if n % lanes == 0:
            return lanes, False
    return 128, True


def _pick_tile_rows(lanes, itemsize):
    """Keep the block ~8 MiB regardless of dtype; multiple of 32 rows covers
    f32 (8), bf16 (16) and int8 (32) sublane tiling constraints."""
    rows = _TARGET_BLOCK_BYTES // (lanes * itemsize)
    return max(32, (rows // 32) * 32)


def pt_module_forward(x):
    """Equivalent of PtModule.forward for an arbitrary-rank input."""
    orig_shape = x.shape
    dtype = x.dtype

    flat = x.reshape(-1)
    n = flat.shape[0]
    if n == 0:
        # Empty tensor: nothing to launch.
        return (x + jnp.asarray(5, dtype)) * jnp.asarray(2, dtype)

    lanes, needs_pad = _pick_lanes(n)
    if needs_pad:
        # Rare path: n not a multiple of 128 -> pad only the lane dim.
        n_padded = ((n + lanes - 1) // lanes) * lanes
        flat = jnp.pad(flat, (0, n_padded - n))
    else:
        n_padded = n

    rows = n_padded // lanes
    tile_rows = _pick_tile_rows(lanes, jnp.dtype(dtype).itemsize)
    # Full-dim block for small inputs (allowed even if rows % 8 != 0);
    # otherwise fixed tile with a Pallas-handled partial last block.
    block_rows = tile_rows if rows >= tile_rows else rows
    grid = (pl.cdiv(rows, block_rows),)

    x2 = flat.reshape(rows, lanes)

    out2 = pl.pallas_call(
        _add5_mul2_kernel,
        out_shape=jax.ShapeDtypeStruct((rows, lanes), dtype),
        grid_spec=pl.GridSpec(
            grid=grid,
            in_specs=[pl.BlockSpec((block_rows, lanes), lambda i: (i, 0))],
            out_specs=pl.BlockSpec((block_rows, lanes), lambda i: (i, 0)),
        ),
        compiler_params=pltpu.CompilerParams(
            dimension_semantics=("parallel",),
            vmem_limit_bytes=_VMEM_LIMIT_BYTES,
        ),
    )(x2)

    out_flat = out2.reshape(-1)
    if needs_pad:
        out_flat = out_flat[:n]  # only pays a copy on the rare padded path
    return out_flat.reshape(orig_shape)


if __name__ == "__main__":
    key = jax.random.PRNGKey(0)

    # Small NCHW-like tensor consistent with the module: (B=2, C=4, H=16, W=16)
    x = jax.random.normal(key, (2, 4, 16, 16), dtype=jnp.float32)
    out = pt_module_forward(x)
    jax.block_until_ready(out)
    ref = (x + 5.0) * 2.0
    assert out.shape == x.shape, "shape mismatch vs reference"
    assert jnp.allclose(out, ref, atol=1e-6, rtol=1e-6), "mismatch vs reference"

    # Sanity: odd element count exercising the lane-pad path.
    k1, k2 = jax.random.split(key)
    x_odd = jax.random.normal(k1, (3, 5, 7), dtype=jnp.float32)
    out_odd = pt_module_forward(x_odd)
    jax.block_until_ready(out_odd)
    assert jnp.allclose(out_odd, (x_odd + 5.0) * 2.0, atol=1e-6, rtol=1e-6), \
        "mismatch vs reference (padded path)"

    # Sanity: multi-block grid with a partial last block (rows=2500, tile=2048).
    x_big = jax.random.normal(k2, (2500, 1024), dtype=jnp.float32)
    out_big = pt_module_forward(x_big)
    jax.block_until_ready(out_big)
    assert jnp.allclose(out_big, (x_big + 5.0) * 2.0, atol=1e-6, rtol=1e-6), \
        "mismatch vs reference (partial-block path)"

    print("KERNEL_OK")
</pallas_src>

<mosaic_0001>
module attributes {stable_mosaic.version = 11 : i64} {
  func.func @_add5_mul2_kernel(%arg0: i32, %arg1: memref<2x1024xf32, #tpu.memory_space<vmem>>, %arg2: memref<2x1024xf32, #tpu.memory_space<vmem>>) attributes {dimension_semantics = [#tpu.dimension_semantics<parallel>], iteration_bounds = array<i64: 1>, scalar_prefetch = 0 : i64, scratch_operands = 0 : i64, tpu.core_type = #tpu.core_type<tc>, window_params = [{transform_indices = @transform_0, window_bounds = array<i64: 2, 1024>}, {transform_indices = @transform_1, window_bounds = array<i64: 2, 1024>}]} {
    %c0 = arith.constant 0 : index
    %c0_0 = arith.constant 0 : index
    %0 = vector.load %arg1[%c0, %c0_0] : memref<2x1024xf32, #tpu.memory_space<vmem>>, vector<2x1024xf32>
    %cst = arith.constant 5.000000e+00 : f32
    %1 = vector.broadcast %cst : f32 to vector<2x1024xf32>
    %2 = arith.addf %0, %1 : vector<2x1024xf32>
    %cst_1 = arith.constant 2.000000e+00 : f32
    %3 = vector.broadcast %cst_1 : f32 to vector<2x1024xf32>
    %4 = arith.mulf %2, %3 : vector<2x1024xf32>
    %c0_2 = arith.constant 0 : index
    %c0_3 = arith.constant 0 : index
    %5 = vector.load %arg2[%c0_2, %c0_3] : memref<2x1024xf32, #tpu.memory_space<vmem>>, vector<2x1024xf32>
    tpu.vector_store %arg2[%c0_2, %c0_3], %4 {strides = array<i32>} : memref<2x1024xf32, #tpu.memory_space<vmem>>, vector<2x1024xf32>,
    return
  }
  func.func @transform_0(%arg0: i32) -> (i32, i32) {
    %c0_i32 = arith.constant 0 : i32
    %c0_i32_0 = arith.constant 0 : i32
    return %arg0, %c0_i32 : i32, i32
  }
  func.func @transform_1(%arg0: i32) -> (i32, i32) {
    %c0_i32 = arith.constant 0 : i32
    %c0_i32_0 = arith.constant 0 : i32
    return %arg0, %c0_i32 : i32, i32
  }
}

</mosaic_0001>

<llo_original>
// kernel: tpu_custom_call.1
$region0: #{tpu_custom_call.1}
  #allocation0 [shape = 'u32[]', space=smem, size = 0x4, offset = 0x4, fixed_abs, tag = 'smem constant byte address 0x4 - core index']
  #allocation1 [shape = 'u32[144,128]{1,0:T(1,128)}', space=vmem, size = 0x12000, scoped, tag = 'internal scratch']
  %s0 = inlined_call_operand.hbm [shape: f32[2,1024], index: 0, kind: input, shape index: {}]
  %s1 = inlined_call_operand.hbm [shape: f32[2,1024], index: 1, kind: output, shape index: {}]
  %s2 = sld [smem:[#allocation0]]
  $region18: #{tpu_custom_call.1} parent=0
    _
  %s4 = ssub.s32 1, %s2
  %s5 = scalar_select 0, %s4, %s2
  $region1: #{tpu_custom_call.1} parent=0
    #allocation2 [shape = 'u8[8192]{0}', space=vmem, size = 0x2000, scoped, tag = 'input window, operand 0, single buffered']
    #allocation3 [shape = 's32[1]{0}', space=sflag, size = 0x4, scoped, tag = 'scoped memory for tpu_custom_call.1']
    #allocation4 [shape = 's32[1]{0}', space=sflag, size = 0x4, scoped, tag = 'scoped memory for tpu_custom_call.1']
    #allocation5 [shape = 'u8[8192]{0}', space=vmem, size = 0x2000, scoped, tag = 'output window, operand 0, single buffered']
    %6 = vsyncpa [#allocation3], 0
    %7 = vsyncpa [#allocation4], 0
    // Predicated region
    $region2: #{tpu_custom_call.1} parent=1 // pred_check
      _
    $region3: #{tpu_custom_call.1} parent=1 // pred_check_branch
      %9 = sbr.rel (0) target = $region5
    $region4: #{tpu_custom_call.1} parent=1 // pred_region
      %s11 = ssub.s32 256, 256
      %12 = vsyncadd [#allocation3], %s11
      %s14 = sshll.u32 [#allocation2], 4
      %s15 = int_to_ptr.vmem [resolvable:$true] %s14
      %17 = dma.hbm_to_vmem [thread:$0]  %s0, 256, %s15, [#allocation3]
    $region5: #{tpu_custom_call.1} parent=1 // pred_fallthru
      _
    // Predicated region
    $region6: #{tpu_custom_call.1} parent=1 // pred_check
      _
    $region7: #{tpu_custom_call.1} parent=1 // pred_check_branch
      %19 = sbr.rel (0) target = $region9
    $region8: #{tpu_custom_call.1} parent=1 // pred_region
      %20 = dma.done [#allocation3], 256
    $region9: #{tpu_custom_call.1} parent=1 // pred_fallthru
      _
    %v21 = vld [vmem:[#allocation2] sm:$0xff]
    %v22 = vld [vmem:[#allocation2 + $0x8] sm:$0xff]
    %v23 = vadd.f32 %v21, 5.0
    %v24 = vadd.f32 %v22, 5.0
    %v25 = vmul.f32 %v23, 2.0
    %v26 = vmul.f32 %v24, 2.0
    %27 = vst [vmem:[#allocation5] sm:$0xff] %v25
    %28 = vst [vmem:[#allocation5 + $0x8] sm:$0xff] %v26
    // Predicated region
    $region10: #{tpu_custom_call.1} parent=1 // pred_check
      _
    $region11: #{tpu_custom_call.1} parent=1 // pred_check_branch
      %30 = sbr.rel (0) target = $region13
    $region12: #{tpu_custom_call.1} parent=1 // pred_region
      %s32 = ssub.s32 256, 256
      %33 = vsyncadd [#allocation4], %s32
      %s35 = sshll.u32 [#allocation5], 4
      %s36 = int_to_ptr.vmem [resolvable:$true] %s35
      %38 = dma.vmem_to_hbm [thread:$0]  %s36, 256, %s1, [#allocation4]
    $region13: #{tpu_custom_call.1} parent=1 // pred_fallthru
      _
    // Predicated region
    $region14: #{tpu_custom_call.1} parent=1 // pred_check
      _
    $region15: #{tpu_custom_call.1} parent=1 // pred_check_branch
      %40 = sbr.rel (0) target = $region17
    $region16: #{tpu_custom_call.1} parent=1 // pred_region
      %41 = dma.done [#allocation4], 256
    $region17: #{tpu_custom_call.1} parent=1 // pred_fallthru
      _
    %42 = vsyncpa [#allocation3], 1
    %43 = vsyncpa [#allocation4], 1

</llo_original>
